<compile_context>
chip_gen: v7x
topology: tpu7x:2x2x1
jax: 0.10.0
libtpu: 0.0.40
codegen_flags: <defaults>
</compile_context>

<pallas_src>
import jax
import jax.numpy as jnp
from jax import lax
from jax.experimental import pallas as pl
from jax.experimental.pallas import tpu as pltpu


def self_attentive_kernel(x_ref, w1_ref, w2_ref, out_ref, a_ref):
    # x_ref:   (B*T, D)  batch folded into the projection matmuls
    # w1_ref:  (D, U)    ws1 weight, pre-transposed once at param conversion
    # w2_ref:  (U, H)    ws2 weight, pre-transposed once at param conversion
    # out_ref: (B, H, D)
    # a_ref:   (B, H, T) — module's post-transpose layout, emitted directly
    B, H, T = a_ref.shape

    x = x_ref[...]                                            # (B*T, D)

    # A = tanh(ws1(x)): canonical (M,K)x(K,N) contraction on the MXU.
    a1 = jnp.tanh(
        lax.dot_general(
            x, w1_ref[...],
            dimension_numbers=(((1,), (0,)), ((), ())),
            preferred_element_type=jnp.float32))              # (B*T, U)

    # A = ws2(A): canonical contraction again.
    s = lax.dot_general(
        a1, w2_ref[...],
        dimension_numbers=(((1,), (0,)), ((), ())),
        preferred_element_type=jnp.float32)                   # (B*T, H)

    # Per-batch: transpose the tiny (T, H) score tile to (H, T) (one XLU op,
    # free slot), softmax over the lane axis T, then the MXU-canonical
    # (H, T) x (T, D) weighted sum.  B is tiny -> static unroll, static slices.
    for b in range(B):
        s_b = jnp.transpose(s[b * T:(b + 1) * T, :])          # (H, T)
        m = jnp.max(s_b, axis=1, keepdims=True)               # (H, 1)
        e = jnp.exp(s_b - m)                                  # (H, T)
        denom = jnp.sum(e, axis=1, keepdims=True)             # (H, 1)
        p_b = e * pl.reciprocal(denom, approx=False)          # (H, T)

        out_b = lax.dot_general(
            p_b, x[b * T:(b + 1) * T, :],
            dimension_numbers=(((1,), (0,)), ((), ())),
            preferred_element_type=jnp.float32)                # (H, D)

        out_ref[b] = out_b.astype(out_ref.dtype)
        a_ref[b] = p_b.astype(a_ref.dtype)

    # Scaling note: if B or T grows, replace the whole-array specs + static
    # Python loop with grid=(B,) (or row tiles of B*T), per-block BlockSpecs
    # with index_maps, dimension_semantics=("parallel",...) (2 TCs on v7x),
    # and re-derive the VMEM budget (64 MiB physical on v7x vs 128 MiB
    # on v5e/v6e).  At B=2, T=8 that is pure overhead, so it is not done here.

    # TODO(synk): nn.Dropout(p=0.5) is identity in eval mode; training-mode
    # stochastic dropout (pltpu.prng_seed + prng_random_bits) is not applied.


def convert_torch_params(w1_torch, w2_torch):
    """One-time parameter conversion from torch Linear (out, in) layout to the
    MXU-canonical (in, out) layout consumed by the kernel.  Call once at
    init / checkpoint-load time, NOT per forward call."""
    return jnp.transpose(w1_torch), jnp.transpose(w2_torch)   # (D, U), (U, H)


@jax.jit
def self_attentive_layer(x, w1_t, w2_t):
    """x: (B, T, D) f32; w1_t: (D, U); w2_t: (U, H) (pre-converted params)."""
    B, T, D = x.shape
    U = w1_t.shape[1]
    H = w2_t.shape[1]

    # Fold batch into the projection matmuls; contiguous reshape is free in XLA.
    x2d = x.reshape(B * T, D)

    out, attn = pl.pallas_call(
        self_attentive_kernel,
        out_shape=(
            jax.ShapeDtypeStruct((B, H, D), x.dtype),
            jax.ShapeDtypeStruct((B, H, T), x.dtype),
        ),
        in_specs=[
            pl.BlockSpec(memory_space=pltpu.MemorySpace.VMEM),
            pl.BlockSpec(memory_space=pltpu.MemorySpace.VMEM),
            pl.BlockSpec(memory_space=pltpu.MemorySpace.VMEM),
        ],
        out_specs=(
            pl.BlockSpec(memory_space=pltpu.MemorySpace.VMEM),
            pl.BlockSpec(memory_space=pltpu.MemorySpace.VMEM),
        ),
        cost_estimate=pl.CostEstimate(
            flops=2 * (B * T * D * U + B * T * U * H + B * H * T * D),
            transcendentals=B * T * (U + H),
            bytes_accessed=4 * (B * T * D + U * D + H * U + B * H * D + B * H * T),
        ),
    )(x2d, w1_t, w2_t)

    # No post-kernel transpose: A is already (B, H, T), matching the module.
    return out, attn


def reference(x, w1, w2):
    # w1, w2 in torch (out, in) layout.
    a = jnp.tanh(jnp.einsum("btd,ud->btu", x, w1))
    s = jnp.einsum("btu,hu->bth", a, w2)
    p = jax.nn.softmax(s, axis=1)
    a_t = jnp.transpose(p, (0, 2, 1))
    out = jnp.einsum("bht,btd->bhd", a_t, x)
    return out, a_t


if __name__ == "__main__":
    # Module hyperparameters (small, consistent with the forward pass)
    atten_in_dim = 32      # D
    attention_unit = 16    # U
    num_heads = 5          # H
    B, T = 2, 8

    key = jax.random.PRNGKey(0)
    kx, k1, k2 = jax.random.split(key, 3)

    x = jax.random.normal(kx, (B, T, atten_in_dim), dtype=jnp.float32)
    # init_weights: uniform(-0.1, 0.1), PyTorch Linear weight layout (out, in)
    w1 = jax.random.uniform(k1, (attention_unit, atten_in_dim),
                            minval=-0.1, maxval=0.1, dtype=jnp.float32)
    w2 = jax.random.uniform(k2, (num_heads, attention_unit),
                            minval=-0.1, maxval=0.1, dtype=jnp.float32)

    # One-time parameter conversion (outside the jitted forward).
    w1_t, w2_t = convert_torch_params(w1, w2)

    out, attn = self_attentive_layer(x, w1_t, w2_t)
    out = jax.block_until_ready(out)
    attn = jax.block_until_ready(attn)

    ref_out, ref_attn = reference(x, w1, w2)
    assert jnp.allclose(out, ref_out, atol=1e-5, rtol=1e-5)
    assert jnp.allclose(attn, ref_attn, atol=1e-5, rtol=1e-5)

    print("KERNEL_OK")
</pallas_src>

<mosaic_0001>
module attributes {stable_mosaic.version = 11 : i64} {
  func.func @self_attentive_kernel(%arg0: memref<16x32xf32, #tpu.memory_space<vmem>>, %arg1: memref<32x16xf32, #tpu.memory_space<vmem>>, %arg2: memref<16x5xf32, #tpu.memory_space<vmem>>, %arg3: memref<2x5x32xf32, #tpu.memory_space<vmem>>, %arg4: memref<2x5x8xf32, #tpu.memory_space<vmem>>) attributes {dimension_semantics = [], scalar_prefetch = 0 : i64, scratch_operands = 0 : i64, tpu.core_type = #tpu.core_type<tc>} {
    %c0 = arith.constant 0 : index
    %c0_0 = arith.constant 0 : index
    %0 = vector.load %arg0[%c0, %c0_0] : memref<16x32xf32, #tpu.memory_space<vmem>>, vector<16x32xf32>
    %c0_1 = arith.constant 0 : index
    %c0_2 = arith.constant 0 : index
    %1 = vector.load %arg1[%c0_1, %c0_2] : memref<32x16xf32, #tpu.memory_space<vmem>>, vector<32x16xf32>
    %cst = arith.constant dense<0.000000e+00> : vector<16x16xf32>
    %2 = tpu.matmul %0, %1, %cst {dimension_numbers = #tpu.dot_dimension_numbers<[1], [0], [0], [1], [0, 0, 1, 1], [], []>} : vector<16x32xf32>, vector<32x16xf32>, vector<16x16xf32> -> vector<16x16xf32>
    %3 = math.tanh %2 : vector<16x16xf32>
    %c0_3 = arith.constant 0 : index
    %c0_4 = arith.constant 0 : index
    %4 = vector.load %arg2[%c0_3, %c0_4] : memref<16x5xf32, #tpu.memory_space<vmem>>, vector<16x5xf32>
    %cst_5 = arith.constant dense<0.000000e+00> : vector<16x5xf32>
    %5 = tpu.matmul %3, %4, %cst_5 {dimension_numbers = #tpu.dot_dimension_numbers<[1], [0], [0], [1], [0, 0, 1, 1], [], []>} : vector<16x16xf32>, vector<16x5xf32>, vector<16x5xf32> -> vector<16x5xf32>
    %6 = vector.extract_strided_slice %5 {offsets = [0, 0], sizes = [8, 5], strides = [1, 1]} : vector<16x5xf32> to vector<8x5xf32>
    %7 = tpu.transpose %6, [1, 0] : vector<8x5xf32> -> vector<5x8xf32>
    %cst_6 = arith.constant dense<0xFF800000> : vector<5xf32>
    %8 = vector.multi_reduction <maximumf>, %7, %cst_6 [1] : vector<5x8xf32> to vector<5xf32>
    %9 = vector.shape_cast %8 : vector<5xf32> to vector<5x1xf32>
    %10 = vector.broadcast %9 : vector<5x1xf32> to vector<5x8xf32>
    %11 = arith.subf %7, %10 : vector<5x8xf32>
    %12 = math.exp %11 : vector<5x8xf32>
    %cst_7 = arith.constant dense<0.000000e+00> : vector<5xf32>
    %13 = vector.multi_reduction <add>, %12, %cst_7 [1] : vector<5x8xf32> to vector<5xf32>
    %14 = vector.shape_cast %13 : vector<5xf32> to vector<5x1xf32>
    %15 = tpu.reciprocal %14 : vector<5x1xf32> -> vector<5x1xf32>
    %16 = vector.broadcast %15 : vector<5x1xf32> to vector<5x8xf32>
    %17 = arith.mulf %12, %16 : vector<5x8xf32>
    %18 = vector.extract_strided_slice %0 {offsets = [0, 0], sizes = [8, 32], strides = [1, 1]} : vector<16x32xf32> to vector<8x32xf32>
    %cst_8 = arith.constant dense<0.000000e+00> : vector<5x32xf32>
    %19 = tpu.matmul %17, %18, %cst_8 {dimension_numbers = #tpu.dot_dimension_numbers<[1], [0], [0], [1], [0, 0, 1, 1], [], []>} : vector<5x8xf32>, vector<8x32xf32>, vector<5x32xf32> -> vector<5x32xf32>
    %c0_9 = arith.constant 0 : index
    %c0_10 = arith.constant 0 : index
    %c0_11 = arith.constant 0 : index
    %20 = vector.load %arg3[%c0_9, %c0_10, %c0_11] : memref<2x5x32xf32, #tpu.memory_space<vmem>>, vector<1x5x32xf32>
    %21 = vector.shape_cast %20 : vector<1x5x32xf32> to vector<5x32xf32>
    %22 = vector.shape_cast %19 : vector<5x32xf32> to vector<1x5x32xf32>
    tpu.vector_store %arg3[%c0_9, %c0_10, %c0_11], %22 {strides = array<i32>} : memref<2x5x32xf32, #tpu.memory_space<vmem>>, vector<1x5x32xf32>,
    %c0_12 = arith.constant 0 : index
    %c0_13 = arith.constant 0 : index
    %c0_14 = arith.constant 0 : index
    %23 = vector.load %arg4[%c0_12, %c0_13, %c0_14] : memref<2x5x8xf32, #tpu.memory_space<vmem>>, vector<1x5x8xf32>
    %24 = vector.shape_cast %23 : vector<1x5x8xf32> to vector<5x8xf32>
    %25 = vector.shape_cast %17 : vector<5x8xf32> to vector<1x5x8xf32>
    tpu.vector_store %arg4[%c0_12, %c0_13, %c0_14], %25 {strides = array<i32>} : memref<2x5x8xf32, #tpu.memory_space<vmem>>, vector<1x5x8xf32>,
    %26 = vector.extract_strided_slice %5 {offsets = [8, 0], sizes = [8, 5], strides = [1, 1]} : vector<16x5xf32> to vector<8x5xf32>
    %27 = tpu.transpose %26, [1, 0] : vector<8x5xf32> -> vector<5x8xf32>
    %cst_15 = arith.constant dense<0xFF800000> : vector<5xf32>
    %28 = vector.multi_reduction <maximumf>, %27, %cst_15 [1] : vector<5x8xf32> to vector<5xf32>
    %29 = vector.shape_cast %28 : vector<5xf32> to vector<5x1xf32>
    %30 = vector.broadcast %29 : vector<5x1xf32> to vector<5x8xf32>
    %31 = arith.subf %27, %30 : vector<5x8xf32>
    %32 = math.exp %31 : vector<5x8xf32>
    %cst_16 = arith.constant dense<0.000000e+00> : vector<5xf32>
    %33 = vector.multi_reduction <add>, %32, %cst_16 [1] : vector<5x8xf32> to vector<5xf32>
    %34 = vector.shape_cast %33 : vector<5xf32> to vector<5x1xf32>
    %35 = tpu.reciprocal %34 : vector<5x1xf32> -> vector<5x1xf32>
    %36 = vector.broadcast %35 : vector<5x1xf32> to vector<5x8xf32>
    %37 = arith.mulf %32, %36 : vector<5x8xf32>
    %38 = vector.extract_strided_slice %0 {offsets = [8, 0], sizes = [8, 32], strides = [1, 1]} : vector<16x32xf32> to vector<8x32xf32>
    %cst_17 = arith.constant dense<0.000000e+00> : vector<5x32xf32>
    %39 = tpu.matmul %37, %38, %cst_17 {dimension_numbers = #tpu.dot_dimension_numbers<[1], [0], [0], [1], [0, 0, 1, 1], [], []>} : vector<5x8xf32>, vector<8x32xf32>, vector<5x32xf32> -> vector<5x32xf32>
    %c1 = arith.constant 1 : index
    %c0_18 = arith.constant 0 : index
    %c0_19 = arith.constant 0 : index
    %40 = vector.load %arg3[%c1, %c0_18, %c0_19] : memref<2x5x32xf32, #tpu.memory_space<vmem>>, vector<1x5x32xf32>
    %41 = vector.shape_cast %40 : vector<1x5x32xf32> to vector<5x32xf32>
    %42 = vector.shape_cast %39 : vector<5x32xf32> to vector<1x5x32xf32>
    tpu.vector_store %arg3[%c1, %c0_18, %c0_19], %42 {strides = array<i32>} : memref<2x5x32xf32, #tpu.memory_space<vmem>>, vector<1x5x32xf32>,
    %c1_20 = arith.constant 1 : index
    %c0_21 = arith.constant 0 : index
    %c0_22 = arith.constant 0 : index
    %43 = vector.load %arg4[%c1_20, %c0_21, %c0_22] : memref<2x5x8xf32, #tpu.memory_space<vmem>>, vector<1x5x8xf32>
    %44 = vector.shape_cast %43 : vector<1x5x8xf32> to vector<5x8xf32>
    %45 = vector.shape_cast %37 : vector<5x8xf32> to vector<1x5x8xf32>
    tpu.vector_store %arg4[%c1_20, %c0_21, %c0_22], %45 {strides = array<i32>} : memref<2x5x8xf32, #tpu.memory_space<vmem>>, vector<1x5x8xf32>,
    return
  }
}

</mosaic_0001>

<llo_original>
// kernel: self_attentive_layer.1
$region0: #{self_attentive_layer.1}
  #allocation0 [shape = 'u32[]', space=smem, size = 0x4, offset = 0x4, fixed_abs, tag = 'smem constant byte address 0x4 - core index']
  #allocation1 [shape = 'u32[144,128]{1,0:T(1,128)}', space=vmem, size = 0x12000, scoped, tag = 'internal scratch']
  %s0 = inlined_call_operand.vmem [shape: f32[16,32], index: 0, kind: input, shape index: {}]
  %s1 = inlined_call_operand.vmem [shape: f32[32,16], index: 1, kind: input, shape index: {}]
  %s2 = inlined_call_operand.vmem [shape: f32[16,5], index: 2, kind: input, shape index: {}]
  %s3 = inlined_call_operand.vmem [shape: f32[2,5,32], index: 3, kind: output, shape index: {0}]
  %s4 = inlined_call_operand.vmem [shape: f32[2,5,8], index: 4, kind: output, shape index: {1}]
  %5 = xla_tuple %s3, %s4
  %s6 = sld [smem:[#allocation0]]
  $region30: #{self_attentive_layer.1} parent=0
    _
  %s8 = ssub.s32 1, %s6
  %s9 = scalar_select 0, %s8, %s6
  // Predicated region
  $region2: #{self_attentive_layer.1} parent=0 // pred_check
    _
  $region3: #{self_attentive_layer.1} parent=0 // pred_check_branch
    %11 = sbr.rel (0) target = $region5
  $region4: #{self_attentive_layer.1} parent=0 // pred_region
    _
  $region5: #{self_attentive_layer.1} parent=0 // pred_fallthru
    _
  // Predicated region
  $region6: #{self_attentive_layer.1} parent=0 // pred_check
    _
  $region7: #{self_attentive_layer.1} parent=0 // pred_check_branch
    %13 = sbr.rel (0) target = $region9
  $region8: #{self_attentive_layer.1} parent=0 // pred_region
    _
  $region9: #{self_attentive_layer.1} parent=0 // pred_fallthru
    _
  // Predicated region
  $region10: #{self_attentive_layer.1} parent=0 // pred_check
    _
  $region11: #{self_attentive_layer.1} parent=0 // pred_check_branch
    %15 = sbr.rel (0) target = $region13
  $region12: #{self_attentive_layer.1} parent=0 // pred_region
    _
  $region13: #{self_attentive_layer.1} parent=0 // pred_fallthru
    _
  %v16 = vld [vmem:[%s0] sm:$0xff]
  %v17 = vld [vmem:[%s0 + $0x8] sm:$0xff]
  %v18 = vld [vmem:[%s1] sm:$0xff]
  %v19 = vld [vmem:[%s1 + $0x8] sm:$0xff]
  %v20 = vld [vmem:[%s1 + $0x10] sm:$0xff]
  %v21 = vld [vmem:[%s1 + $0x18] sm:$0xff]
  %vm22 = vcmask 261120
  %v24 = vsel %vm22, %v16, 0
  %v27 = vsel %vm22, %v17, 0
  %29 = vmatprep.subr.mxu0 0.0
  %30 = vmatpush1.msra.mxu0 %v18
  %31 = vmatprep.subr.mxu0 0.0
  %32 = vmatpush1.msra.mxu0 %v19
  %33 = vmatprep.subr.mxu0 0.0
  %34 = vmatpush1.msra.mxu0 %v20
  %35 = vmatprep.subr.mxu0 0.0
  %36 = vmatpush1.msra.mxu0 %v21
  %37 = vmatprep.subr.mxu0 0.0
  %38 = vmatpush1.msra.mxu0 0.0
  %39 = vmatprep.subr.mxu0 0.0
  %40 = vmatpush1.msra.mxu0 0.0
  %41 = vmatprep.subr.mxu0 0.0
  %42 = vmatpush1.msra.mxu0 0.0
  %43 = vmatprep.subr.mxu0 0.0
  %44 = vmatpush1.msra.mxu0 0.0
  %45 = vmatprep.subr.mxu0 0.0
  %46 = vmatpush1.msra.mxu0 0.0
  %47 = vmatprep.subr.mxu0 0.0
  %48 = vmatpush1.msra.mxu0 0.0
  %49 = vmatprep.subr.mxu0 0.0
  %50 = vmatpush1.msra.mxu0 0.0
  %51 = vmatprep.subr.mxu0 0.0
  %52 = vmatpush1.msra.mxu0 0.0
  %53 = vmatprep.subr.mxu0 0.0
  %54 = vmatpush1.msra.mxu0 0.0
  %55 = vmatprep.subr.mxu0 0.0
  %56 = vmatpush1.msra.mxu0 0.0
  %57 = vmatprep.subr.mxu0 0.0
  %58 = vmatpush1.msra.mxu0 0.0
  %59 = vmatprep.subr.mxu0 0.0
  %60 = vmatpush1.msra.mxu0 0.0
  %61 = vmatprep.subr.mxu0 0.0
  %62 = vmatpush1.msra.mxu0 0.0
  %63 = vmatprep.subr.mxu0 0.0
  %64 = vmatpush1.msra.mxu0 0.0
  %65 = vmatprep.subr.mxu0 0.0
  %66 = vmatpush1.msra.mxu0 0.0
  %67 = vmatprep.subr.mxu0 0.0
  %68 = vmatpush1.msra.mxu0 0.0
  %69 = vmatprep.subr.mxu0 0.0
  %70 = vmatpush1.msra.mxu0 0.0
  %71 = vmatprep.subr.mxu0 0.0
  %72 = vmatpush1.msra.mxu0 0.0
  %73 = vmatprep.subr.mxu0 0.0
  %74 = vmatpush1.msra.mxu0 0.0
  %75 = vmatprep.subr.mxu0 0.0
  %76 = vmatpush1.msra.mxu0 0.0
  %77 = vmatprep.subr.mxu0 0.0
  %78 = vmatpush1.msra.mxu0 0.0
  %79 = vmatprep.subr.mxu0 0.0
  %80 = vmatpush1.msra.mxu0 0.0
  %81 = vmatprep.subr.mxu0 0.0
  %82 = vmatpush1.msra.mxu0 0.0
  %83 = vmatprep.subr.mxu0 0.0
  %84 = vmatpush1.msra.mxu0 0.0
  %85 = vmatprep.subr.mxu0 0.0
  %86 = vmatpush1.msra.mxu0 0.0
  %87 = vmatprep.subr.mxu0 0.0
  %88 = vmatpush1.msra.mxu0 0.0
  %89 = vmatprep.subr.mxu0 0.0
  %90 = vmatpush1.msra.mxu0 0.0
  %91 = vmatprep.subr.mxu0 0.0
  %92 = vmatpush1.msra.mxu0 0.0
  %93 = vmatprep.mubr.f32.mxu0 0.0
  %94 = vmatmul.mubr.f32.gmra.mrb[0].mxu0 %v24
  %v95 = vpop.f32.mrb[0].mxu0
  %v96 = vadd.f32 0.0, %v95
  %v97 = vpop.f32.mrb[0].mxu0
  %98 = vmatprep.mubr.f32.mxu0 0.0
  %99 = vmatmul.mubr.f32.gmra.mrb[0].mxu0 %v27
  %v100 = vpop.f32.mrb[0].mxu0
  %v101 = vadd.f32 0.0, %v100
  %v102 = vpop.f32.mrb[0].mxu0
  %103 = vdwg.mxu0
  %v104 = vtanh.pop %v96
  %v105 = vtanh.pop %v101
  %v106 = vld [vmem:[%s2] sm:$0xff]
  %v107 = vld [vmem:[%s2 + $0x8] sm:$0xff]
  %vm108 = vcmask 130048
  %v110 = vsel %vm108, %v104, 0
  %v113 = vsel %vm108, %v105, 0
  %115 = vmatprep.subr.mxu0 0.0
  %116 = vmatpush1.msra.mxu0 %v106
  %117 = vmatprep.subr.mxu0 0.0
  %118 = vmatpush1.msra.mxu0 %v107
  %119 = vmatprep.subr.mxu0 0.0
  %120 = vmatpush1.msra.mxu0 0.0
  %121 = vmatprep.subr.mxu0 0.0
  %122 = vmatpush1.msra.mxu0 0.0
  %123 = vmatprep.subr.mxu0 0.0
  %124 = vmatpush1.msra.mxu0 0.0
  %125 = vmatprep.subr.mxu0 0.0
  %126 = vmatpush1.msra.mxu0 0.0
  %127 = vmatprep.subr.mxu0 0.0
  %128 = vmatpush1.msra.mxu0 0.0
  %129 = vmatprep.subr.mxu0 0.0
  %130 = vmatpush1.msra.mxu0 0.0
  %131 = vmatprep.subr.mxu0 0.0
  %132 = vmatpush1.msra.mxu0 0.0
  %133 = vmatprep.subr.mxu0 0.0
  %134 = vmatpush1.msra.mxu0 0.0
  %135 = vmatprep.subr.mxu0 0.0
  %136 = vmatpush1.msra.mxu0 0.0
  %137 = vmatprep.subr.mxu0 0.0
  %138 = vmatpush1.msra.mxu0 0.0
  %139 = vmatprep.subr.mxu0 0.0
  %140 = vmatpush1.msra.mxu0 0.0
  %141 = vmatprep.subr.mxu0 0.0
  %142 = vmatpush1.msra.mxu0 0.0
  %143 = vmatprep.subr.mxu0 0.0
  %144 = vmatpush1.msra.mxu0 0.0
  %145 = vmatprep.subr.mxu0 0.0
  %146 = vmatpush1.msra.mxu0 0.0
  %147 = vmatprep.subr.mxu0 0.0
  %148 = vmatpush1.msra.mxu0 0.0
  %149 = vmatprep.subr.mxu0 0.0
  %150 = vmatpush1.msra.mxu0 0.0
  %151 = vmatprep.subr.mxu0 0.0
  %152 = vmatpush1.msra.mxu0 0.0
  %153 = vmatprep.subr.mxu0 0.0
  %154 = vmatpush1.msra.mxu0 0.0
  %155 = vmatprep.subr.mxu0 0.0
  %156 = vmatpush1.msra.mxu0 0.0
  %157 = vmatprep.subr.mxu0 0.0
  %158 = vmatpush1.msra.mxu0 0.0
  %159 = vmatprep.subr.mxu0 0.0
  %160 = vmatpush1.msra.mxu0 0.0
  %161 = vmatprep.subr.mxu0 0.0
  %162 = vmatpush1.msra.mxu0 0.0
  %163 = vmatprep.subr.mxu0 0.0
  %164 = vmatpush1.msra.mxu0 0.0
  %165 = vmatprep.subr.mxu0 0.0
  %166 = vmatpush1.msra.mxu0 0.0
  %167 = vmatprep.subr.mxu0 0.0
  %168 = vmatpush1.msra.mxu0 0.0
  %169 = vmatprep.subr.mxu0 0.0
  %170 = vmatpush1.msra.mxu0 0.0
  %171 = vmatprep.subr.mxu0 0.0
  %172 = vmatpush1.msra.mxu0 0.0
  %173 = vmatprep.subr.mxu0 0.0
  %174 = vmatpush1.msra.mxu0 0.0
  %175 = vmatprep.subr.mxu0 0.0
  %176 = vmatpush1.msra.mxu0 0.0
  %177 = vmatprep.subr.mxu0 0.0
  %178 = vmatpush1.msra.mxu0 0.0
  %179 = vmatprep.mubr.f32.mxu0 0.0
  %180 = vmatmul.mubr.f32.gmra.mrb[0].mxu0 %v110
  %v181 = vpop.f32.mrb[0].mxu0
  %v182 = vadd.f32 0.0, %v181
  %v183 = vpop.f32.mrb[0].mxu0
  %184 = vmatprep.mubr.f32.mxu0 0.0
  %185 = vmatmul.mubr.f32.gmra.mrb[0].mxu0 %v113
  %v186 = vpop.f32.mrb[0].mxu0
  %v187 = vadd.f32 0.0, %v186
  %v188 = vpop.f32.mrb[0].mxu0
  %189 = vdwg.mxu0
  %190 = vxpose.xlu0.b32.start [1/16] %v182, 128
  %191 = vxpose.xlu0.b32.cont [2/16] 0.0, 128
  %192 = vxpose.xlu0.b32.cont [3/16] 0.0, 128
  %193 = vxpose.xlu0.b32.cont [4/16] 0.0, 128
  %194 = vxpose.xlu0.b32.cont [5/16] 0.0, 128
  %195 = vxpose.xlu0.b32.cont [6/16] 0.0, 128
  %196 = vxpose.xlu0.b32.cont [7/16] 0.0, 128
  %197 = vxpose.xlu0.b32.cont [8/16] 0.0, 128
  %198 = vxpose.xlu0.b32.cont [9/16] 0.0, 128
  %199 = vxpose.xlu0.b32.cont [10/16] 0.0, 128
  %200 = vxpose.xlu0.b32.cont [11/16] 0.0, 128
  %201 = vxpose.xlu0.b32.cont [12/16] 0.0, 128
  %202 = vxpose.xlu0.b32.cont [13/16] 0.0, 128
  %203 = vxpose.xlu0.b32.cont [14/16] 0.0, 128
  %204 = vxpose.xlu0.b32.cont [15/16] 0.0, 128
  %205 = vxpose.xlu0.b32.end [16/16] 0.0, 128
  %v206 = vpop.trf.xlu0
  %v207 = vpop.trf.xlu0
  %v208 = vpop.trf.xlu0
  %v209 = vpop.trf.xlu0
  %v210 = vpop.trf.xlu0
  %v211 = vpop.trf.xlu0
  %v212 = vpop.trf.xlu0
  %v213 = vpop.trf.xlu0
  %v214 = vpop.trf.xlu0
  %v215 = vpop.trf.xlu0
  %v216 = vpop.trf.xlu0
  %v217 = vpop.trf.xlu0
  %v218 = vpop.trf.xlu0
  %v219 = vpop.trf.xlu0
  %v220 = vpop.trf.xlu0
  %v221 = vpop.trf.xlu0
  %vm222 = vcmask 61440
  %v223 = vsel %vm222, %v206, -inf
  %224 = vmax.xlane.f32.xlu0 %v223
  %v225 = vpop.xlane.xlu0 %224
  %v226 = vsub.f32 %v206, %v225
  %v227 = vmul.f32 %v226, 1.442695
  %v228 = vpow.pop %v227
  %v229 = vsel %vm222, %v228, 0.0
  %230 = vadd.xlane.f32.xlu0 %v229
  %v231 = vpop.xlane.xlu0 %230
  %v232 = vrcp.pop %v231
  %v233 = vmul.f32 %v228, %v232
  %vm234 = vcmask 64512
  %v236 = vsel %vm234, %v233, 0
  %238 = vmatprep.subr.mxu0 0.0
  %239 = vmatpush1.msra.mxu0 %v16
  %240 = vmatprep.subr.mxu0 0.0
  %241 = vmatpush1.msra.mxu0 0.0
  %242 = vmatprep.subr.mxu0 0.0
  %243 = vmatpush1.msra.mxu0 0.0
  %244 = vmatprep.subr.mxu0 0.0
  %245 = vmatpush1.msra.mxu0 0.0
  %246 = vmatprep.subr.mxu0 0.0
  %247 = vmatpush1.msra.mxu0 0.0
  %248 = vmatprep.subr.mxu0 0.0
  %249 = vmatpush1.msra.mxu0 0.0
  %250 = vmatprep.subr.mxu0 0.0
  %251 = vmatpush1.msra.mxu0 0.0
  %252 = vmatprep.subr.mxu0 0.0
  %253 = vmatpush1.msra.mxu0 0.0
  %254 = vmatprep.subr.mxu0 0.0
  %255 = vmatpush1.msra.mxu0 0.0
  %256 = vmatprep.subr.mxu0 0.0
  %257 = vmatpush1.msra.mxu0 0.0
  %258 = vmatprep.subr.mxu0 0.0
  %259 = vmatpush1.msra.mxu0 0.0
  %260 = vmatprep.subr.mxu0 0.0
  %261 = vmatpush1.msra.mxu0 0.0
  %262 = vmatprep.subr.mxu0 0.0
  %263 = vmatpush1.msra.mxu0 0.0
  %264 = vmatprep.subr.mxu0 0.0
  %265 = vmatpush1.msra.mxu0 0.0
  %266 = vmatprep.subr.mxu0 0.0
  %267 = vmatpush1.msra.mxu0 0.0
  %268 = vmatprep.subr.mxu0 0.0
  %269 = vmatpush1.msra.mxu0 0.0
  %270 = vmatprep.subr.mxu0 0.0
  %271 = vmatpush1.msra.mxu0 0.0
  %272 = vmatprep.subr.mxu0 0.0
  %273 = vmatpush1.msra.mxu0 0.0
  %274 = vmatprep.subr.mxu0 0.0
  %275 = vmatpush1.msra.mxu0 0.0
  %276 = vmatprep.subr.mxu0 0.0
  %277 = vmatpush1.msra.mxu0 0.0
  %278 = vmatprep.subr.mxu0 0.0
  %279 = vmatpush1.msra.mxu0 0.0
  %280 = vmatprep.subr.mxu0 0.0
  %281 = vmatpush1.msra.mxu0 0.0
  %282 = vmatprep.subr.mxu0 0.0
  %283 = vmatpush1.msra.mxu0 0.0
  %284 = vmatprep.subr.mxu0 0.0
  %285 = vmatpush1.msra.mxu0 0.0
  %286 = vmatprep.subr.mxu0 0.0
  %287 = vmatpush1.msra.mxu0 0.0
  %288 = vmatprep.subr.mxu0 0.0
  %289 = vmatpush1.msra.mxu0 0.0
  %290 = vmatprep.subr.mxu0 0.0
  %291 = vmatpush1.msra.mxu0 0.0
  %292 = vmatprep.subr.mxu0 0.0
  %293 = vmatpush1.msra.mxu0 0.0
  %294 = vmatprep.subr.mxu0 0.0
  %295 = vmatpush1.msra.mxu0 0.0
  %296 = vmatprep.subr.mxu0 0.0
  %297 = vmatpush1.msra.mxu0 0.0
  %298 = vmatprep.subr.mxu0 0.0
  %299 = vmatpush1.msra.mxu0 0.0
  %300 = vmatprep.subr.mxu0 0.0
  %301 = vmatpush1.msra.mxu0 0.0
  %302 = vmatprep.mubr.f32.mxu0 0.0
  %303 = vmatmul.mubr.f32.gmra.mrb[0].mxu0 %v236
  %v304 = vpop.f32.mrb[0].mxu0
  %v305 = vadd.f32 0.0, %v304
  %v306 = vpop.f32.mrb[0].mxu0
  %307 = vdwg.mxu0
  %vm308 = vcmask 258048
  %309 = vst.msk [vmem:[%s3] sm:$0x1f] %vm308, %v305
  %310 = vst.msk [vmem:[%s4] sm:$0x1f] %vm222, %v233
  %311 = vxpose.xlu0.b32.start [1/16] %v187, 128
  %312 = vxpose.xlu0.b32.cont [2/16] 0.0, 128
  %313 = vxpose.xlu0.b32.cont [3/16] 0.0, 128
  %314 = vxpose.xlu0.b32.cont [4/16] 0.0, 128
  %315 = vxpose.xlu0.b32.cont [5/16] 0.0, 128
  %316 = vxpose.xlu0.b32.cont [6/16] 0.0, 128
  %317 = vxpose.xlu0.b32.cont [7/16] 0.0, 128
  %318 = vxpose.xlu0.b32.cont [8/16] 0.0, 128
  %319 = vxpose.xlu0.b32.cont [9/16] 0.0, 128
  %320 = vxpose.xlu0.b32.cont [10/16] 0.0, 128
  %321 = vxpose.xlu0.b32.cont [11/16] 0.0, 128
  %322 = vxpose.xlu0.b32.cont [12/16] 0.0, 128
  %323 = vxpose.xlu0.b32.cont [13/16] 0.0, 128
  %324 = vxpose.xlu0.b32.cont [14/16] 0.0, 128
  %325 = vxpose.xlu0.b32.cont [15/16] 0.0, 128
  %326 = vxpose.xlu0.b32.end [16/16] 0.0, 128
  %v327 = vpop.trf.xlu0
  %v328 = vpop.trf.xlu0
  %v329 = vpop.trf.xlu0
  %v330 = vpop.trf.xlu0
  %v331 = vpop.trf.xlu0
  %v332 = vpop.trf.xlu0
  %v333 = vpop.trf.xlu0
  %v334 = vpop.trf.xlu0
  %v335 = vpop.trf.xlu0
  %v336 = vpop.trf.xlu0
  %v337 = vpop.trf.xlu0
  %v338 = vpop.trf.xlu0
  %v339 = vpop.trf.xlu0
  %v340 = vpop.trf.xlu0
  %v341 = vpop.trf.xlu0
  %v342 = vpop.trf.xlu0
  %v343 = vsel %vm222, %v327, -inf
  %344 = vmax.xlane.f32.xlu0 %v343
  %v345 = vpop.xlane.xlu0 %344
  %v346 = vsub.f32 %v327, %v345
  %v347 = vmul.f32 %v346, 1.442695
  %v348 = vpow.pop %v347
  %v349 = vsel %vm222, %v348, 0.0
  %350 = vadd.xlane.f32.xlu0 %v349
  %v351 = vpop.xlane.xlu0 %350
  %v352 = vrcp.pop %v351
  %v353 = vmul.f32 %v348, %v352
  %v355 = vsel %vm234, %v353, 0
  %357 = vmatprep.subr.mxu0 0.0
  %358 = vmatpush1.msra.mxu0 %v17
  %359 = vmatprep.subr.mxu0 0.0
  %360 = vmatpush1.msra.mxu0 0.0
  %361 = vmatprep.subr.mxu0 0.0
  %362 = vmatpush1.msra.mxu0 0.0
  %363 = vmatprep.subr.mxu0 0.0
  %364 = vmatpush1.msra.mxu0 0.0
  %365 = vmatprep.subr.mxu0 0.0
  %366 = vmatpush1.msra.mxu0 0.0
  %367 = vmatprep.subr.mxu0 0.0
  %368 = vmatpush1.msra.mxu0 0.0
  %369 = vmatprep.subr.mxu0 0.0
  %370 = vmatpush1.msra.mxu0 0.0
  %371 = vmatprep.subr.mxu0 0.0
  %372 = vmatpush1.msra.mxu0 0.0
  %373 = vmatprep.subr.mxu0 0.0
  %374 = vmatpush1.msra.mxu0 0.0
  %375 = vmatprep.subr.mxu0 0.0
  %376 = vmatpush1.msra.mxu0 0.0
  %377 = vmatprep.subr.mxu0 0.0
  %378 = vmatpush1.msra.mxu0 0.0
  %379 = vmatprep.subr.mxu0 0.0
  %380 = vmatpush1.msra.mxu0 0.0
  %381 = vmatprep.subr.mxu0 0.0
  %382 = vmatpush1.msra.mxu0 0.0
  %383 = vmatprep.subr.mxu0 0.0
  %384 = vmatpush1.msra.mxu0 0.0
  %385 = vmatprep.subr.mxu0 0.0
  %386 = vmatpush1.msra.mxu0 0.0
  %387 = vmatprep.subr.mxu0 0.0
  %388 = vmatpush1.msra.mxu0 0.0
  %389 = vmatprep.subr.mxu0 0.0
  %390 = vmatpush1.msra.mxu0 0.0
  %391 = vmatprep.subr.mxu0 0.0
  %392 = vmatpush1.msra.mxu0 0.0
  %393 = vmatprep.subr.mxu0 0.0
  %394 = vmatpush1.msra.mxu0 0.0
  %395 = vmatprep.subr.mxu0 0.0
  %396 = vmatpush1.msra.mxu0 0.0
  %397 = vmatprep.subr.mxu0 0.0
  %398 = vmatpush1.msra.mxu0 0.0
  %399 = vmatprep.subr.mxu0 0.0
  %400 = vmatpush1.msra.mxu0 0.0
  %401 = vmatprep.subr.mxu0 0.0
  %402 = vmatpush1.msra.mxu0 0.0
  %403 = vmatprep.subr.mxu0 0.0
  %404 = vmatpush1.msra.mxu0 0.0
  %405 = vmatprep.subr.mxu0 0.0
  %406 = vmatpush1.msra.mxu0 0.0
  %407 = vmatprep.subr.mxu0 0.0
  %408 = vmatpush1.msra.mxu0 0.0
  %409 = vmatprep.subr.mxu0 0.0
  %410 = vmatpush1.msra.mxu0 0.0
  %411 = vmatprep.subr.mxu0 0.0
  %412 = vmatpush1.msra.mxu0 0.0
  %413 = vmatprep.subr.mxu0 0.0
  %414 = vmatpush1.msra.mxu0 0.0
  %415 = vmatprep.subr.mxu0 0.0
  %416 = vmatpush1.msra.mxu0 0.0
  %417 = vmatprep.subr.mxu0 0.0
  %418 = vmatpush1.msra.mxu0 0.0
  %419 = vmatprep.subr.mxu0 0.0
  %420 = vmatpush1.msra.mxu0 0.0
  %421 = vmatprep.mubr.f32.mxu0 0.0
  %422 = vmatmul.mubr.f32.gmra.mrb[0].mxu0 %v355
  %v423 = vpop.f32.mrb[0].mxu0
  %v424 = vadd.f32 0.0, %v423
  %v425 = vpop.f32.mrb[0].mxu0
  %426 = vdwg.mxu0
  %s427 = scalar_lea.vmem %s3, 8
  %428 = vst.msk [vmem:[%s427] sm:$0x1f] %vm308, %v424
  %s429 = scalar_lea.vmem %s4, 8
  %430 = vst.msk [vmem:[%s429] sm:$0x1f] %vm222, %v353
  // Predicated region
  $region14: #{self_attentive_layer.1} parent=0 // pred_check
    _
  $region15: #{self_attentive_layer.1} parent=0 // pred_check_branch
    %432 = sbr.rel (0) target = $region17
  $region16: #{self_attentive_layer.1} parent=0 // pred_region
    _
  $region17: #{self_attentive_layer.1} parent=0 // pred_fallthru
    _
  // Predicated region
  $region18: #{self_attentive_layer.1} parent=0 // pred_check
    _
  $region19: #{self_attentive_layer.1} parent=0 // pred_check_branch
    %434 = sbr.rel (0) target = $region21
  $region20: #{self_attentive_layer.1} parent=0 // pred_region
    _
  $region21: #{self_attentive_layer.1} parent=0 // pred_fallthru
    _
  // Predicated region
  $region22: #{self_attentive_layer.1} parent=0 // pred_check
    _
  $region23: #{self_attentive_layer.1} parent=0 // pred_check_branch
    %436 = sbr.rel (0) target = $region25
  $region24: #{self_attentive_layer.1} parent=0 // pred_region
    _
  $region25: #{self_attentive_layer.1} parent=0 // pred_fallthru
    _
  // Predicated region
  $region26: #{self_attentive_layer.1} parent=0 // pred_check
    _
  $region27: #{self_attentive_layer.1} parent=0 // pred_check_branch
    %438 = sbr.rel (0) target = $region29
  $region28: #{self_attentive_layer.1} parent=0 // pred_region
    _
  $region29: #{self_attentive_layer.1} parent=0 // pred_fallthru
    _

</llo_original>
